<compile_context>
chip_gen: v6e
topology: v6e:2x2x1
jax: 0.10.0
libtpu: 0.0.40
codegen_flags: <defaults>
</compile_context>

<pallas_src>
import functools

import jax
import jax.numpy as jnp
from jax import lax
from jax.experimental import pallas as pl
from jax.experimental.pallas import tpu as pltpu


def _round_up(x: int, m: int) -> int:
    return ((x + m - 1) // m) * m


# Keep the double-buffered (2 inputs x 2 buffers) tile working set under this
# so the kernel fits comfortably inside v7x's 64 MiB physical VMEM.
_VMEM_TILE_BUDGET = 40 * 1024 * 1024


def _l2_normalize(x: jax.Array, eps: float = 1e-12) -> jax.Array:
    """torch.nn.functional.normalize(x, dim=1): x / max(||x||, eps)."""
    x = x.astype(jnp.float32)
    inv = lax.rsqrt(jnp.maximum(jnp.sum(x * x, axis=1, keepdims=True),
                                eps * eps))
    return x * inv


def _bilateral_kernel(f1_ref, f2_ref, rowloss_ref, colloss_ref,
                      m_r, l_r, d_r, m_c, l_c, d_c, *,
                      batch: int, padded_batch: int, tile: int):
    """One (query_tile, key_tile) step of the fused bilateral InfoNCE."""
    q = pl.program_id(0)
    k = pl.program_id(1)
    nq = pl.num_programs(0)
    nk = pl.num_programs(1)
    has_pad = padded_batch != batch          # static Python bool

    # ---- accumulator init --------------------------------------------------
    @pl.when(k == 0)
    def _():                                  # per-query-tile row accumulators
        m_r[...] = jnp.full_like(m_r, -jnp.inf)
        l_r[...] = jnp.zeros_like(l_r)

    @pl.when(q == 0)
    def _():                                  # per-key-tile column accumulators
        m_c[k] = jnp.full((1, tile), -jnp.inf, jnp.float32)
        l_c[k] = jnp.zeros((1, tile), jnp.float32)

    # ---- single MXU matmul serves both loss directions ---------------------
    # (tile, D) . (tile, D)^T contracted over D, f32 accumulate, no transpose.
    sim = lax.dot_general(
        f1_ref[...], f2_ref[...],
        dimension_numbers=(((1,), (1,)), ((), ())),
        preferred_element_type=jnp.float32)            # (tile_q, tile_k)

    # ---- positive-pair (diagonal) logits, taken from sim itself ------------
    @pl.when(k == q)
    def _():
        ii = lax.broadcasted_iota(jnp.int32, sim.shape, 0)
        jj = lax.broadcasted_iota(jnp.int32, sim.shape, 1)
        dsel = jnp.where(ii == jj, sim, 0.0)
        d_r[...] = jnp.sum(dsel, axis=1, keepdims=True)   # (tile, 1)
        d_c[k] = jnp.sum(dsel, axis=0, keepdims=True)     # (1, tile)

    # ---- row direction: infonce(f1, f2), logsumexp over key columns --------
    sim_r = sim
    if has_pad:
        # Only the last key tile has padded columns; static check means this
        # costs nothing for padding-free batches.
        col = k * tile + lax.broadcasted_iota(jnp.int32, sim.shape, 1)
        sim_r = jnp.where(col < batch, sim, -1e30)
    m_prev = m_r[...]
    m_new = jnp.maximum(m_prev, jnp.max(sim_r, axis=1, keepdims=True))
    alpha = jnp.exp(m_prev - m_new)
    l_r[...] = alpha * l_r[...] + jnp.sum(jnp.exp(sim_r - m_new), axis=1,
                                          keepdims=True)
    m_r[...] = m_new

    # ---- column direction: infonce(f2, f1), logsumexp over query rows ------
    sim_c = sim
    if has_pad:
        row = q * tile + lax.broadcasted_iota(jnp.int32, sim.shape, 0)
        sim_c = jnp.where(row < batch, sim, -1e30)
    mc_prev = m_c[k]
    mc_new = jnp.maximum(mc_prev, jnp.max(sim_c, axis=0, keepdims=True))
    beta = jnp.exp(mc_prev - mc_new)
    l_c[k] = beta * l_c[k] + jnp.sum(jnp.exp(sim_c - mc_new), axis=0,
                                     keepdims=True)
    m_c[k] = mc_new

    # ---- finalize -----------------------------------------------------------
    @pl.when(k == nk - 1)
    def _():
        loss_row = jnp.log(l_r[...]) + m_r[...] - d_r[...]
        if has_pad:
            row = q * tile + lax.broadcasted_iota(jnp.int32, loss_row.shape, 0)
            loss_row = jnp.where(row < batch, loss_row, 0.0)
        rowloss_ref[...] = loss_row

    @pl.when(q == nq - 1)
    def _():
        loss_col = jnp.log(l_c[k]) + m_c[k] - d_c[k]
        if has_pad:
            col = k * tile + lax.broadcasted_iota(jnp.int32, loss_col.shape, 1)
            loss_col = jnp.where(col < batch, loss_col, 0.0)
        colloss_ref[k] = loss_col


def _fused_bilateral(f1q: jax.Array, f2n: jax.Array, *,
                     block_rows: int = 256) -> jax.Array:
    """infonce(f1,f2) + infonce(f2,f1) (each mean over batch) in ONE kernel.

    `f1q` must be L2-normalized WITH 1/temperature folded in; `f2n` must be
    L2-normalized.  The single sim = f1q @ f2n^T then carries the 1/T factor
    for both directions (the column direction is just sim^T).
    """
    assert f1q.shape == f2n.shape and f1q.ndim == 2
    assert f1q.dtype == f2n.dtype
    assert block_rows % 8 == 0
    b, d = f1q.shape
    itemsize = jnp.dtype(f1q.dtype).itemsize

    # Query/key tile size: multiple of 8 (sublane); shrink until the
    # double-buffered input working set fits the VMEM budget (v7x safe).
    tile = min(block_rows, _round_up(b, 8))
    while tile >= 256 and 4 * tile * d * itemsize > _VMEM_TILE_BUDGET:
        tile //= 2

    bp = _round_up(b, tile)
    if bp != b:
        pad = bp - b
        f1q = jnp.pad(f1q, ((0, pad), (0, 0)))
        f2n = jnp.pad(f2n, ((0, pad), (0, 0)))
    nq = nk = bp // tile

    kernel = functools.partial(_bilateral_kernel,
                               batch=b, padded_batch=bp, tile=tile)

    # Explicit VMEM sizing: double-buffered input tiles + (lane/sublane
    # padded) accumulators + generous compiler margin.
    in_tiles = 4 * tile * d * itemsize
    row_aux = 4 * tile * 128 * 4
    col_aux = 4 * nk * 8 * tile * 4
    vmem_limit = int(min(in_tiles + row_aux + col_aux + (16 << 20), 100 << 20))

    rowloss, colloss = pl.pallas_call(
        kernel,
        out_shape=(jax.ShapeDtypeStruct((bp, 1), jnp.float32),
                   jax.ShapeDtypeStruct((nk, 1, tile), jnp.float32)),
        grid_spec=pltpu.PrefetchScalarGridSpec(
            num_scalar_prefetch=0,
            grid=(nq, nk),
            in_specs=[
                pl.BlockSpec((tile, d), lambda i, k: (i, 0)),   # queries f1
                pl.BlockSpec((tile, d), lambda i, k: (k, 0)),   # keys f2
            ],
            out_specs=[
                # Row losses: one tile per query block, written on last k.
                pl.BlockSpec((tile, 1), lambda i, k: (i, 0)),
                # Column losses: resident across the whole grid (tiny),
                # each k-slab written on the last query tile.
                pl.BlockSpec((nk, 1, tile), lambda i, k: (0, 0, 0)),
            ],
            scratch_shapes=[
                pltpu.VMEM((tile, 1), jnp.float32),      # m_row
                pltpu.VMEM((tile, 1), jnp.float32),      # l_row
                pltpu.VMEM((tile, 1), jnp.float32),      # diag (row view)
                pltpu.VMEM((nk, 1, tile), jnp.float32),  # m_col (persistent)
                pltpu.VMEM((nk, 1, tile), jnp.float32),  # l_col (persistent)
                pltpu.VMEM((nk, 1, tile), jnp.float32),  # diag (col view)
            ],
        ),
        compiler_params=pltpu.CompilerParams(
            # Column accumulators carry state across the query axis, so both
            # axes stay sequential; the 2x from fusing both loss directions
            # dominates the lost megacore split on v7x.
            dimension_semantics=("arbitrary", "arbitrary"),
            vmem_limit_bytes=vmem_limit),
        cost_estimate=pl.CostEstimate(
            flops=2 * bp * bp * d,
            transcendentals=2 * bp * bp,
            bytes_accessed=2 * bp * d * itemsize + 2 * bp * 4),
    )(f1q, f2n)

    # Tiny epilogue (padded entries are zeroed inside the kernel).
    return (jnp.sum(rowloss) + jnp.sum(colloss)) / b


def bilateral_infonce_loss(features1, features2, temperature: float = 0.1, *,
                           block_rows: int = 256, mxu_dtype=None) -> jax.Array:
    """infonce(f1,f2) + infonce(f2,f1); normalization hoisted out of the grid."""
    assert features1.shape == features2.shape and features1.ndim == 2
    assert features1.dtype == features2.dtype
    if mxu_dtype is None:
        mxu_dtype = (jnp.bfloat16 if features1.dtype == jnp.bfloat16
                     else jnp.float32)
    f1q = (_l2_normalize(features1) * (1.0 / temperature)).astype(mxu_dtype)
    f2n = _l2_normalize(features2).astype(mxu_dtype)
    return _fused_bilateral(f1q, f2n, block_rows=block_rows)


def description_contrastive_loss(visual_feature, audio_feature,
                                 va_fusion_feature, description_feature,
                                 temperature: float = 0.1,
                                 v_d_weight: float = 1.0,
                                 a_d_weight: float = 1.0,
                                 va_d_weight: float = 1.0, *,
                                 block_rows: int = 256,
                                 mxu_dtype=None) -> jax.Array:
    """Forward pass of DescriptionContrastiveLoss."""
    feats = (visual_feature, audio_feature, va_fusion_feature,
             description_feature)
    if mxu_dtype is None:
        mxu_dtype = (jnp.bfloat16
                     if all(f.dtype == jnp.bfloat16 for f in feats)
                     else jnp.float32)
    inv_t = 1.0 / temperature
    # Description feature normalized ONCE, shared by all three pairs.
    d_n = _l2_normalize(description_feature).astype(mxu_dtype)

    def one_pair(f, w):
        assert f.shape == description_feature.shape
        fq = (_l2_normalize(f) * inv_t).astype(mxu_dtype)
        return w * _fused_bilateral(fq, d_n, block_rows=block_rows)

    return (one_pair(visual_feature, v_d_weight)
            + one_pair(audio_feature, a_d_weight)
            + one_pair(va_fusion_feature, va_d_weight))


# ---------------- pure-JAX reference (mirrors the PyTorch module) -----------

def _reference_infonce(f1, f2, temperature=0.1):
    f1n = f1 / jnp.maximum(jnp.linalg.norm(f1, axis=1, keepdims=True), 1e-12)
    f2n = f2 / jnp.maximum(jnp.linalg.norm(f2, axis=1, keepdims=True), 1e-12)
    sim = f1n @ f2n.T / temperature
    n = sim.shape[0]
    logp = jax.nn.log_softmax(sim, axis=1)
    return -jnp.mean(logp[jnp.arange(n), jnp.arange(n)])


def _reference_bilateral(f1, f2, temperature=0.1):
    return (_reference_infonce(f1, f2, temperature)
            + _reference_infonce(f2, f1, temperature))


def _reference_description_loss(v, a, va, d, temperature=0.1,
                                v_w=1.0, a_w=1.0, va_w=1.0):
    return (v_w * _reference_bilateral(v, d, temperature)
            + a_w * _reference_bilateral(a, d, temperature)
            + va_w * _reference_bilateral(va, d, temperature))


if __name__ == "__main__":
    # --- main check: the module forward at small shapes (f32, no padding) ---
    batch, feature_dim = 8, 32
    key = jax.random.PRNGKey(0)
    kv, ka, kva, kd, k1, k2 = jax.random.split(key, 6)
    visual = jax.random.normal(kv, (batch, feature_dim), dtype=jnp.float32)
    audio = jax.random.normal(ka, (batch, feature_dim), dtype=jnp.float32)
    va_fusion = jax.random.normal(kva, (batch, feature_dim), dtype=jnp.float32)
    description = jax.random.normal(kd, (batch, feature_dim), dtype=jnp.float32)

    loss = description_contrastive_loss(visual, audio, va_fusion, description,
                                        temperature=0.1)
    loss = jax.block_until_ready(loss)
    ref = _reference_description_loss(visual, audio, va_fusion, description,
                                      temperature=0.1)
    assert jnp.allclose(loss, ref, rtol=2e-3, atol=2e-3), (loss, ref)

    # --- multi-tile + padding path (exercises masks and the col accumulators)
    f1 = jax.random.normal(k1, (37, 64), dtype=jnp.float32)
    f2 = jax.random.normal(k2, (37, 64), dtype=jnp.float32)
    loss_p = jax.block_until_ready(
        bilateral_infonce_loss(f1, f2, temperature=0.1, block_rows=16))
    ref_p = _reference_bilateral(f1, f2, temperature=0.1)
    assert jnp.allclose(loss_p, ref_p, rtol=2e-3, atol=2e-3), (loss_p, ref_p)

    # --- bf16 MXU path (looser tolerance: bf16-rounded normalized features) -
    f1b = f1[:16].astype(jnp.bfloat16)
    f2b = f2[:16].astype(jnp.bfloat16)
    loss_b = jax.block_until_ready(
        bilateral_infonce_loss(f1b, f2b, temperature=0.1))
    ref_b = _reference_bilateral(f1b.astype(jnp.float32),
                                 f2b.astype(jnp.float32), temperature=0.1)
    assert jnp.isfinite(loss_b)
    assert jnp.allclose(loss_b, ref_b, rtol=5e-2, atol=1e-1), (loss_b, ref_b)

    print("KERNEL_OK")
</pallas_src>

<mosaic_0001>
module attributes {stable_mosaic.version = 11 : i64} {
  func.func @_bilateral_kernel(%arg0: i32, %arg1: i32, %arg2: memref<8x32xf32, #tpu.memory_space<vmem>>, %arg3: memref<8x32xf32, #tpu.memory_space<vmem>>, %arg4: memref<8x1xf32, #tpu.memory_space<vmem>>, %arg5: memref<1x1x8xf32, #tpu.memory_space<vmem>>, %arg6: memref<8x1xf32, #tpu.memory_space<vmem>>, %arg7: memref<8x1xf32, #tpu.memory_space<vmem>>, %arg8: memref<8x1xf32, #tpu.memory_space<vmem>>, %arg9: memref<1x1x8xf32, #tpu.memory_space<vmem>>, %arg10: memref<1x1x8xf32, #tpu.memory_space<vmem>>, %arg11: memref<1x1x8xf32, #tpu.memory_space<vmem>>) attributes {dimension_semantics = [#tpu.dimension_semantics<arbitrary>, #tpu.dimension_semantics<arbitrary>], iteration_bounds = array<i64: 1, 1>, scalar_prefetch = 0 : i64, scratch_operands = 6 : i64, tpu.core_type = #tpu.core_type<tc>, window_params = [{transform_indices = @transform_0, window_bounds = array<i64: 8, 32>}, {transform_indices = @transform_1, window_bounds = array<i64: 8, 32>}, {transform_indices = @transform_2, window_bounds = array<i64: 8, 1>}, {pipeline_mode = #tpu.pipeline_mode<synchronous>, transform_indices = @transform_3, window_bounds = array<i64: 1, 1, 8>}]} {
    %c0_i32 = arith.constant 0 : i32
    %0 = arith.cmpi eq, %arg1, %c0_i32 : i32
    %1 = arith.extui %0 : i1 to i32
    %c0_i32_0 = arith.constant 0 : i32
    %2 = arith.cmpi ne, %1, %c0_i32_0 : i32
    scf.if %2 {
      %cst_31 = arith.constant 0xFF800000 : f32
      %60 = vector.broadcast %cst_31 : f32 to vector<8x1xf32>
      %c0_32 = arith.constant 0 : index
      %c0_33 = arith.constant 0 : index
      %61 = vector.load %arg6[%c0_32, %c0_33] : memref<8x1xf32, #tpu.memory_space<vmem>>, vector<8x1xf32>
      tpu.vector_store %arg6[%c0_32, %c0_33], %60 {strides = array<i32>} : memref<8x1xf32, #tpu.memory_space<vmem>>, vector<8x1xf32>,
      %cst_34 = arith.constant 0.000000e+00 : f32
      %62 = vector.broadcast %cst_34 : f32 to vector<8x1xf32>
      %c0_35 = arith.constant 0 : index
      %c0_36 = arith.constant 0 : index
      %63 = vector.load %arg7[%c0_35, %c0_36] : memref<8x1xf32, #tpu.memory_space<vmem>>, vector<8x1xf32>
      tpu.vector_store %arg7[%c0_35, %c0_36], %62 {strides = array<i32>} : memref<8x1xf32, #tpu.memory_space<vmem>>, vector<8x1xf32>,
    } else {
    }
    %c0_i32_1 = arith.constant 0 : i32
    %3 = arith.cmpi eq, %arg0, %c0_i32_1 : i32
    %4 = arith.extui %3 : i1 to i32
    %c0_i32_2 = arith.constant 0 : i32
    %5 = arith.cmpi ne, %4, %c0_i32_2 : i32
    scf.if %5 {
      %cst_31 = arith.constant 0xFF800000 : f32
      %60 = vector.broadcast %cst_31 : f32 to vector<1x8xf32>
      %61 = arith.index_cast %arg1 : i32 to index
      %c0_32 = arith.constant 0 : index
      %c0_33 = arith.constant 0 : index
      %62 = vector.load %arg9[%61, %c0_32, %c0_33] : memref<1x1x8xf32, #tpu.memory_space<vmem>>, vector<1x1x8xf32>
      %63 = vector.shape_cast %62 : vector<1x1x8xf32> to vector<1x8xf32>
      %64 = vector.shape_cast %60 : vector<1x8xf32> to vector<1x1x8xf32>
      tpu.vector_store %arg9[%61, %c0_32, %c0_33], %64 {strides = array<i32>} : memref<1x1x8xf32, #tpu.memory_space<vmem>>, vector<1x1x8xf32>,
      %cst_34 = arith.constant 0.000000e+00 : f32
      %65 = vector.broadcast %cst_34 : f32 to vector<1x8xf32>
      %66 = arith.index_cast %arg1 : i32 to index
      %c0_35 = arith.constant 0 : index
      %c0_36 = arith.constant 0 : index
      %67 = vector.load %arg10[%66, %c0_35, %c0_36] : memref<1x1x8xf32, #tpu.memory_space<vmem>>, vector<1x1x8xf32>
      %68 = vector.shape_cast %67 : vector<1x1x8xf32> to vector<1x8xf32>
      %69 = vector.shape_cast %65 : vector<1x8xf32> to vector<1x1x8xf32>
      tpu.vector_store %arg10[%66, %c0_35, %c0_36], %69 {strides = array<i32>} : memref<1x1x8xf32, #tpu.memory_space<vmem>>, vector<1x1x8xf32>,
    } else {
    }
    %c0 = arith.constant 0 : index
    %c0_3 = arith.constant 0 : index
    %6 = vector.load %arg2[%c0, %c0_3] : memref<8x32xf32, #tpu.memory_space<vmem>>, vector<8x32xf32>
    %c0_4 = arith.constant 0 : index
    %c0_5 = arith.constant 0 : index
    %7 = vector.load %arg3[%c0_4, %c0_5] : memref<8x32xf32, #tpu.memory_space<vmem>>, vector<8x32xf32>
    %cst = arith.constant dense<0.000000e+00> : vector<8x8xf32>
    %8 = tpu.matmul %6, %7, %cst {dimension_numbers = #tpu.dot_dimension_numbers<[1], [1], [0], [0], [0, 0, 1, 0], [], []>} : vector<8x32xf32>, vector<8x32xf32>, vector<8x8xf32> -> vector<8x8xf32>
    %9 = arith.cmpi eq, %arg1, %arg0 : i32
    %10 = arith.extui %9 : i1 to i32
    %c0_i32_6 = arith.constant 0 : i32
    %11 = arith.cmpi ne, %10, %c0_i32_6 : i32
    scf.if %11 {
      %60 = tpu.iota {dimensions = array<i32: 0>} : vector<8x8xi32>
      %61 = tpu.iota {dimensions = array<i32: 1>} : vector<8x8xi32>
      %62 = arith.cmpi eq, %60, %61 : vector<8x8xi32>
      %cst_31 = arith.constant 0.000000e+00 : f32
      %63 = vector.broadcast %cst_31 : f32 to vector<8x8xf32>
      %64 = arith.select %62, %8, %63 : vector<8x8xi1>, vector<8x8xf32>
      %cst_32 = arith.constant dense<0.000000e+00> : vector<8xf32>
      %65 = vector.multi_reduction <add>, %64, %cst_32 [1] : vector<8x8xf32> to vector<8xf32>
      %66 = vector.shape_cast %65 : vector<8xf32> to vector<8x1xf32>
      %c0_33 = arith.constant 0 : index
      %c0_34 = arith.constant 0 : index
      %67 = vector.load %arg8[%c0_33, %c0_34] : memref<8x1xf32, #tpu.memory_space<vmem>>, vector<8x1xf32>
      tpu.vector_store %arg8[%c0_33, %c0_34], %66 {strides = array<i32>} : memref<8x1xf32, #tpu.memory_space<vmem>>, vector<8x1xf32>,
      %cst_35 = arith.constant dense<0.000000e+00> : vector<8xf32>
      %68 = vector.multi_reduction <add>, %64, %cst_35 [0] : vector<8x8xf32> to vector<8xf32>
      %69 = vector.shape_cast %68 : vector<8xf32> to vector<1x8xf32>
      %70 = arith.index_cast %arg1 : i32 to index
      %c0_36 = arith.constant 0 : index
      %c0_37 = arith.constant 0 : index
      %71 = vector.load %arg11[%70, %c0_36, %c0_37] : memref<1x1x8xf32, #tpu.memory_space<vmem>>, vector<1x1x8xf32>
      %72 = vector.shape_cast %71 : vector<1x1x8xf32> to vector<1x8xf32>
      %73 = vector.shape_cast %69 : vector<1x8xf32> to vector<1x1x8xf32>
      tpu.vector_store %arg11[%70, %c0_36, %c0_37], %73 {strides = array<i32>} : memref<1x1x8xf32, #tpu.memory_space<vmem>>, vector<1x1x8xf32>,
    } else {
    }
    %c0_7 = arith.constant 0 : index
    %c0_8 = arith.constant 0 : index
    %12 = vector.load %arg6[%c0_7, %c0_8] : memref<8x1xf32, #tpu.memory_space<vmem>>, vector<8x1xf32>
    %cst_9 = arith.constant dense<0xFF800000> : vector<8xf32>
    %13 = vector.multi_reduction <maximumf>, %8, %cst_9 [1] : vector<8x8xf32> to vector<8xf32>
    %14 = vector.shape_cast %13 : vector<8xf32> to vector<8x1xf32>
    %15 = arith.maximumf %12, %14 : vector<8x1xf32>
    %16 = arith.subf %12, %15 : vector<8x1xf32>
    %17 = math.exp %16 : vector<8x1xf32>
    %c0_10 = arith.constant 0 : index
    %c0_11 = arith.constant 0 : index
    %18 = vector.load %arg7[%c0_10, %c0_11] : memref<8x1xf32, #tpu.memory_space<vmem>>, vector<8x1xf32>
    %19 = arith.mulf %17, %18 : vector<8x1xf32>
    %20 = vector.broadcast %15 : vector<8x1xf32> to vector<8x8xf32>
    %21 = arith.subf %8, %20 : vector<8x8xf32>
    %22 = math.exp %21 : vector<8x8xf32>
    %cst_12 = arith.constant dense<0.000000e+00> : vector<8xf32>
    %23 = vector.multi_reduction <add>, %22, %cst_12 [1] : vector<8x8xf32> to vector<8xf32>
    %24 = vector.shape_cast %23 : vector<8xf32> to vector<8x1xf32>
    %25 = arith.addf %19, %24 : vector<8x1xf32>
    %c0_13 = arith.constant 0 : index
    %c0_14 = arith.constant 0 : index
    %26 = vector.load %arg7[%c0_13, %c0_14] : memref<8x1xf32, #tpu.memory_space<vmem>>, vector<8x1xf32>
    tpu.vector_store %arg7[%c0_13, %c0_14], %25 {strides = array<i32>} : memref<8x1xf32, #tpu.memory_space<vmem>>, vector<8x1xf32>,
    %c0_15 = arith.constant 0 : index
    %c0_16 = arith.constant 0 : index
    %27 = vector.load %arg6[%c0_15, %c0_16] : memref<8x1xf32, #tpu.memory_space<vmem>>, vector<8x1xf32>
    tpu.vector_store %arg6[%c0_15, %c0_16], %15 {strides = array<i32>} : memref<8x1xf32, #tpu.memory_space<vmem>>, vector<8x1xf32>,
    %28 = arith.index_cast %arg1 : i32 to index
    %c0_17 = arith.constant 0 : index
    %c0_18 = arith.constant 0 : index
    %29 = vector.load %arg9[%28, %c0_17, %c0_18] : memref<1x1x8xf32, #tpu.memory_space<vmem>>, vector<1x1x8xf32>
    %30 = vector.shape_cast %29 : vector<1x1x8xf32> to vector<1x8xf32>
    %cst_19 = arith.constant dense<0xFF800000> : vector<8xf32>
    %31 = vector.multi_reduction <maximumf>, %8, %cst_19 [0] : vector<8x8xf32> to vector<8xf32>
    %32 = vector.shape_cast %31 : vector<8xf32> to vector<1x8xf32>
    %33 = arith.maximumf %30, %32 : vector<1x8xf32>
    %34 = arith.subf %30, %33 : vector<1x8xf32>
    %35 = math.exp %34 : vector<1x8xf32>
    %36 = arith.index_cast %arg1 : i32 to index
    %c0_20 = arith.constant 0 : index
    %c0_21 = arith.constant 0 : index
    %37 = vector.load %arg10[%36, %c0_20, %c0_21] : memref<1x1x8xf32, #tpu.memory_space<vmem>>, vector<1x1x8xf32>
    %38 = vector.shape_cast %37 : vector<1x1x8xf32> to vector<1x8xf32>
    %39 = arith.mulf %35, %38 : vector<1x8xf32>
    %40 = vector.broadcast %33 : vector<1x8xf32> to vector<8x8xf32>
    %41 = arith.subf %8, %40 : vector<8x8xf32>
    %42 = math.exp %41 : vector<8x8xf32>
    %cst_22 = arith.constant dense<0.000000e+00> : vector<8xf32>
    %43 = vector.multi_reduction <add>, %42, %cst_22 [0] : vector<8x8xf32> to vector<8xf32>
    %44 = vector.shape_cast %43 : vector<8xf32> to vector<1x8xf32>
    %45 = arith.addf %39, %44 : vector<1x8xf32>
    %46 = arith.index_cast %arg1 : i32 to index
    %c0_23 = arith.constant 0 : index
    %c0_24 = arith.constant 0 : index
    %47 = vector.load %arg10[%46, %c0_23, %c0_24] : memref<1x1x8xf32, #tpu.memory_space<vmem>>, vector<1x1x8xf32>
    %48 = vector.shape_cast %47 : vector<1x1x8xf32> to vector<1x8xf32>
    %49 = vector.shape_cast %45 : vector<1x8xf32> to vector<1x1x8xf32>
    tpu.vector_store %arg10[%46, %c0_23, %c0_24], %49 {strides = array<i32>} : memref<1x1x8xf32, #tpu.memory_space<vmem>>, vector<1x1x8xf32>,
    %50 = arith.index_cast %arg1 : i32 to index
    %c0_25 = arith.constant 0 : index
    %c0_26 = arith.constant 0 : index
    %51 = vector.load %arg9[%50, %c0_25, %c0_26] : memref<1x1x8xf32, #tpu.memory_space<vmem>>, vector<1x1x8xf32>
    %52 = vector.shape_cast %51 : vector<1x1x8xf32> to vector<1x8xf32>
    %53 = vector.shape_cast %33 : vector<1x8xf32> to vector<1x1x8xf32>
    tpu.vector_store %arg9[%50, %c0_25, %c0_26], %53 {strides = array<i32>} : memref<1x1x8xf32, #tpu.memory_space<vmem>>, vector<1x1x8xf32>,
    %c0_i32_27 = arith.constant 0 : i32
    %54 = arith.cmpi eq, %arg1, %c0_i32_27 : i32
    %55 = arith.extui %54 : i1 to i32
    %c0_i32_28 = arith.constant 0 : i32
    %56 = arith.cmpi ne, %55, %c0_i32_28 : i32
    scf.if %56 {
      %c0_31 = arith.constant 0 : index
      %c0_32 = arith.constant 0 : index
      %60 = vector.load %arg7[%c0_31, %c0_32] : memref<8x1xf32, #tpu.memory_space<vmem>>, vector<8x1xf32>
      %61 = math.log %60 : vector<8x1xf32>
      %c0_33 = arith.constant 0 : index
      %c0_34 = arith.constant 0 : index
      %62 = vector.load %arg6[%c0_33, %c0_34] : memref<8x1xf32, #tpu.memory_space<vmem>>, vector<8x1xf32>
      %63 = arith.addf %61, %62 : vector<8x1xf32>
      %c0_35 = arith.constant 0 : index
      %c0_36 = arith.constant 0 : index
      %64 = vector.load %arg8[%c0_35, %c0_36] : memref<8x1xf32, #tpu.memory_space<vmem>>, vector<8x1xf32>
      %65 = arith.subf %63, %64 : vector<8x1xf32>
      %c0_37 = arith.constant 0 : index
      %c0_38 = arith.constant 0 : index
      %66 = vector.load %arg4[%c0_37, %c0_38] : memref<8x1xf32, #tpu.memory_space<vmem>>, vector<8x1xf32>
      tpu.vector_store %arg4[%c0_37, %c0_38], %65 {strides = array<i32>} : memref<8x1xf32, #tpu.memory_space<vmem>>, vector<8x1xf32>,
    } else {
    }
    %c0_i32_29 = arith.constant 0 : i32
    %57 = arith.cmpi eq, %arg0, %c0_i32_29 : i32
    %58 = arith.extui %57 : i1 to i32
    %c0_i32_30 = arith.constant 0 : i32
    %59 = arith.cmpi ne, %58, %c0_i32_30 : i32
    scf.if %59 {
      %60 = arith.index_cast %arg1 : i32 to index
      %c0_31 = arith.constant 0 : index
      %c0_32 = arith.constant 0 : index
      %61 = vector.load %arg10[%60, %c0_31, %c0_32] : memref<1x1x8xf32, #tpu.memory_space<vmem>>, vector<1x1x8xf32>
      %62 = vector.shape_cast %61 : vector<1x1x8xf32> to vector<1x8xf32>
      %63 = math.log %62 : vector<1x8xf32>
      %64 = arith.index_cast %arg1 : i32 to index
      %c0_33 = arith.constant 0 : index
      %c0_34 = arith.constant 0 : index
      %65 = vector.load %arg9[%64, %c0_33, %c0_34] : memref<1x1x8xf32, #tpu.memory_space<vmem>>, vector<1x1x8xf32>
      %66 = vector.shape_cast %65 : vector<1x1x8xf32> to vector<1x8xf32>
      %67 = arith.addf %63, %66 : vector<1x8xf32>
      %68 = arith.index_cast %arg1 : i32 to index
      %c0_35 = arith.constant 0 : index
      %c0_36 = arith.constant 0 : index
      %69 = vector.load %arg11[%68, %c0_35, %c0_36] : memref<1x1x8xf32, #tpu.memory_space<vmem>>, vector<1x1x8xf32>
      %70 = vector.shape_cast %69 : vector<1x1x8xf32> to vector<1x8xf32>
      %71 = arith.subf %67, %70 : vector<1x8xf32>
      %72 = arith.index_cast %arg1 : i32 to index
      %c0_37 = arith.constant 0 : index
      %c0_38 = arith.constant 0 : index
      %73 = vector.load %arg5[%72, %c0_37, %c0_38] : memref<1x1x8xf32, #tpu.memory_space<vmem>>, vector<1x1x8xf32>
      %74 = vector.shape_cast %73 : vector<1x1x8xf32> to vector<1x8xf32>
      %75 = vector.shape_cast %71 : vector<1x8xf32> to vector<1x1x8xf32>
      tpu.vector_store %arg5[%72, %c0_37, %c0_38], %75 {strides = array<i32>} : memref<1x1x8xf32, #tpu.memory_space<vmem>>, vector<1x1x8xf32>,
    } else {
    }
    return
  }
  func.func @transform_0(%arg0: i32, %arg1: i32) -> (i32, i32) {
    %c0_i32 = arith.constant 0 : i32
    %c0_i32_0 = arith.constant 0 : i32
    return %arg0, %c0_i32 : i32, i32
  }
  func.func @transform_1(%arg0: i32, %arg1: i32) -> (i32, i32) {
    %c0_i32 = arith.constant 0 : i32
    %c0_i32_0 = arith.constant 0 : i32
    return %arg1, %c0_i32 : i32, i32
  }
  func.func @transform_2(%arg0: i32, %arg1: i32) -> (i32, i32) {
    %c0_i32 = arith.constant 0 : i32
    %c0_i32_0 = arith.constant 0 : i32
    return %arg0, %c0_i32 : i32, i32
  }
  func.func @transform_3(%arg0: i32, %arg1: i32) -> (i32, i32, i32) {
    %c0_i32 = arith.constant 0 : i32
    %c0_i32_0 = arith.constant 0 : i32
    %c0_i32_1 = arith.constant 0 : i32
    %c0_i32_2 = arith.constant 0 : i32
    return %c0_i32, %c0_i32_0, %c0_i32_1 : i32, i32, i32
  }
}

</mosaic_0001>

<llo_original>
// kernel: tpu_custom_call.1
$region0: #{tpu_custom_call.1}
  #allocation0 [shape = 'u32[]', space=smem, size = 0x4, offset = 0x4, fixed_abs, tag = 'smem constant byte address 0x4 - core index']
  #allocation1 [shape = 'u32[144,128]{1,0:T(1,128)}', space=vmem, size = 0x12000, scoped, tag = 'internal scratch']
  #allocation2 [shape = 'f32[8,1]{1,0:T(8,128)}', space=vmem, size = 0x1000, scoped, tag = 'scratch operand']
  #allocation3 [shape = 'f32[8,1]{1,0:T(8,128)}', space=vmem, size = 0x1000, scoped, tag = 'scratch operand']
  #allocation4 [shape = 'f32[8,1]{1,0:T(8,128)}', space=vmem, size = 0x1000, scoped, tag = 'scratch operand']
  #allocation5 [shape = 'f32[1,1,8]{2,1,0:T(1,128)}', space=vmem, size = 0x200, scoped, tag = 'scratch operand']
  #allocation6 [shape = 'f32[1,1,8]{2,1,0:T(1,128)}', space=vmem, size = 0x200, scoped, tag = 'scratch operand']
  #allocation7 [shape = 'f32[1,1,8]{2,1,0:T(1,128)}', space=vmem, size = 0x200, scoped, tag = 'scratch operand']
  %s0 = inlined_call_operand.hbm [shape: f32[8,32], index: 0, kind: input, shape index: {}]
  %s1 = inlined_call_operand.hbm [shape: f32[8,32], index: 1, kind: input, shape index: {}]
  %s2 = inlined_call_operand.vmem [shape: f32[8,1], index: 2, kind: output, shape index: {0}]
  %s3 = inlined_call_operand.hbm [shape: f32[1,1,8], index: 3, kind: output, shape index: {1}]
  %4 = xla_tuple %s2, %s3
  %s5 = sld [smem:[#allocation0]]
  $region54: #{tpu_custom_call.1} parent=0
    _
  %s7 = ssub.s32 1, %s5
  %s8 = scalar_select 0, %s7, %s5
  $region1: #{tpu_custom_call.1} parent=0
    #allocation8 [shape = 'u8[4096]{0}', space=vmem, size = 0x1000, scoped, tag = 'input window, operand 0, single buffered']
    #allocation9 [shape = 's32[1]{0}', space=sflag, size = 0x4, scoped, tag = 'scoped memory for tpu_custom_call.1']
    #allocation10 [shape = 's32[1]{0}', space=sflag, size = 0x4, scoped, tag = 'scoped memory for tpu_custom_call.1']
    #allocation11 [shape = 'u8[4096]{0}', space=vmem, size = 0x1000, scoped, tag = 'input window, operand 1, single buffered']
    #allocation12 [shape = 's32[1]{0}', space=sflag, size = 0x4, scoped, tag = 'scoped memory for tpu_custom_call.1']
    #allocation13 [shape = 'u8[512]{0}', space=vmem, size = 0x400, scoped, tag = 'output window, operand 1, single buffered']
    %9 = vsyncpa [#allocation9], 0
    %10 = vsyncpa [#allocation12], 0
    %11 = vsyncpa [#allocation10], 0
    // Predicated region
    $region2: #{tpu_custom_call.1} parent=1 // pred_check
      _
    $region3: #{tpu_custom_call.1} parent=1 // pred_check_branch
      %13 = sbr.rel (0) target = $region5
    $region4: #{tpu_custom_call.1} parent=1 // pred_region
      %s15 = ssub.s32 128, 128
      %16 = vsyncadd [#allocation9], %s15
      %s18 = sshll.u32 [#allocation8], 4
      %s19 = int_to_ptr.vmem [resolvable:$true] %s18
      %21 = dma.hbm_to_vmem [thread:$0]  %s0, 128, %s19, [#allocation9]
    $region5: #{tpu_custom_call.1} parent=1 // pred_fallthru
      _
    // Predicated region
    $region6: #{tpu_custom_call.1} parent=1 // pred_check
      _
    $region7: #{tpu_custom_call.1} parent=1 // pred_check_branch
      %23 = sbr.rel (0) target = $region9
    $region8: #{tpu_custom_call.1} parent=1 // pred_region
      %s25 = ssub.s32 128, 128
      %26 = vsyncadd [#allocation12], %s25
      %s28 = sshll.u32 [#allocation11], 4
      %s29 = int_to_ptr.vmem [resolvable:$true] %s28
      %31 = dma.hbm_to_vmem [thread:$0]  %s1, 128, %s29, [#allocation12]
    $region9: #{tpu_custom_call.1} parent=1 // pred_fallthru
      _
    // Predicated region
    $region10: #{tpu_custom_call.1} parent=1 // pred_check
      _
    $region11: #{tpu_custom_call.1} parent=1 // pred_check_branch
      %33 = sbr.rel (0) target = $region13
    $region12: #{tpu_custom_call.1} parent=1 // pred_region
      %34 = dma.done [#allocation9], 128
    $region13: #{tpu_custom_call.1} parent=1 // pred_fallthru
      _
    // Predicated region
    $region14: #{tpu_custom_call.1} parent=1 // pred_check
      _
    $region15: #{tpu_custom_call.1} parent=1 // pred_check_branch
      %36 = sbr.rel (0) target = $region17
    $region16: #{tpu_custom_call.1} parent=1 // pred_region
      %37 = dma.done [#allocation12], 128
    $region17: #{tpu_custom_call.1} parent=1 // pred_fallthru
      _
    %p38 = scmp.eq.s32.totalorder 0, 0
    // Predicated region
    $region18: #{tpu_custom_call.1} parent=1 // pred_check
      %p39 = pneg %p38
    $region19: #{tpu_custom_call.1} parent=1 // pred_check_branch
      %41 = sbr.rel (%p39) target = $region21
    $region20: #{tpu_custom_call.1} parent=1 // pred_region
      %vm42 = vcmask 7168
      %43 = vst.msk [vmem:[#allocation2] sm:$0xff] %vm42, -inf
      %44 = vst.msk [vmem:[#allocation3] sm:$0xff] %vm42, 0.0
    $region21: #{tpu_custom_call.1} parent=1 // pred_fallthru
      _
    %p45 = scmp.eq.s32.totalorder 0, 0
    // Predicated region
    $region22: #{tpu_custom_call.1} parent=1 // pred_check
      %p46 = pneg %p45
    $region23: #{tpu_custom_call.1} parent=1 // pred_check_branch
      %48 = sbr.rel (%p46) target = $region25
    $region24: #{tpu_custom_call.1} parent=1 // pred_region
      %vm49 = vcmask 57344
      %50 = vst.msk [vmem:[#allocation5] sm:$0x1] %vm49, -inf
      %51 = vst.msk [vmem:[#allocation6] sm:$0x1] %vm49, 0.0
    $region25: #{tpu_custom_call.1} parent=1 // pred_fallthru
      _
    %v52 = vld [vmem:[#allocation8] sm:$0xff]
    %v53 = vld [vmem:[#allocation11] sm:$0xff]
    %vm54 = vcmask 261120
    %v56 = vsel %vm54, %v52, 0
    %v59 = vsel %vm54, %v53, 0
    %61 = vmatprep.subr.mxu0 0.0
    %62 = vmatpush1.xpose.msra.mxu0 0.0
    %63 = vmatprep.subr.mxu0 0.0
    %64 = vmatpush1.xpose.msra.mxu0 0.0
    %65 = vmatprep.subr.mxu0 0.0
    %66 = vmatpush1.xpose.msra.mxu0 0.0
    %67 = vmatprep.subr.mxu0 0.0
    %68 = vmatpush1.xpose.msra.mxu0 0.0
    %69 = vmatprep.subr.mxu0 0.0
    %70 = vmatpush1.xpose.msra.mxu0 0.0
    %71 = vmatprep.subr.mxu0 0.0
    %72 = vmatpush1.xpose.msra.mxu0 0.0
    %73 = vmatprep.subr.mxu0 0.0
    %74 = vmatpush1.xpose.msra.mxu0 0.0
    %75 = vmatprep.subr.mxu0 0.0
    %76 = vmatpush1.xpose.msra.mxu0 0.0
    %77 = vmatprep.subr.mxu0 0.0
    %78 = vmatpush1.xpose.msra.mxu0 0.0
    %79 = vmatprep.subr.mxu0 0.0
    %80 = vmatpush1.xpose.msra.mxu0 0.0
    %81 = vmatprep.subr.mxu0 0.0
    %82 = vmatpush1.xpose.msra.mxu0 0.0
    %83 = vmatprep.subr.mxu0 0.0
    %84 = vmatpush1.xpose.msra.mxu0 0.0
    %85 = vmatprep.subr.mxu0 0.0
    %86 = vmatpush1.xpose.msra.mxu0 0.0
    %87 = vmatprep.subr.mxu0 0.0
    %88 = vmatpush1.xpose.msra.mxu0 0.0
    %89 = vmatprep.subr.mxu0 0.0
    %90 = vmatpush1.xpose.msra.mxu0 0.0
    %91 = vmatprep.subr.mxu0 0.0
    %92 = vmatpush1.xpose.msra.mxu0 %v59
    %93 = vmatprep.subr.mxu0 0.0
    %94 = vmatpush2.xpose.msra.mxu0 0.0
    %95 = vmatprep.subr.mxu0 0.0
    %96 = vmatpush2.xpose.msra.mxu0 0.0
    %97 = vmatprep.subr.mxu0 0.0
    %98 = vmatpush2.xpose.msra.mxu0 0.0
    %99 = vmatprep.subr.mxu0 0.0
    %100 = vmatpush2.xpose.msra.mxu0 0.0
    %101 = vmatprep.subr.mxu0 0.0
    %102 = vmatpush2.xpose.msra.mxu0 0.0
    %103 = vmatprep.subr.mxu0 0.0
    %104 = vmatpush2.xpose.msra.mxu0 0.0
    %105 = vmatprep.subr.mxu0 0.0
    %106 = vmatpush2.xpose.msra.mxu0 0.0
    %107 = vmatprep.subr.mxu0 0.0
    %108 = vmatpush2.xpose.msra.mxu0 0.0
    %109 = vmatprep.subr.mxu0 0.0
    %110 = vmatpush2.xpose.msra.mxu0 0.0
    %111 = vmatprep.subr.mxu0 0.0
    %112 = vmatpush2.xpose.msra.mxu0 0.0
    %113 = vmatprep.subr.mxu0 0.0
    %114 = vmatpush2.xpose.msra.mxu0 0.0
    %115 = vmatprep.subr.mxu0 0.0
    %116 = vmatpush2.xpose.msra.mxu0 0.0
    %117 = vmatprep.subr.mxu0 0.0
    %118 = vmatpush2.xpose.msra.mxu0 0.0
    %119 = vmatprep.subr.mxu0 0.0
    %120 = vmatpush2.xpose.msra.mxu0 0.0
    %121 = vmatprep.subr.mxu0 0.0
    %122 = vmatpush2.xpose.msra.mxu0 0.0
    %123 = vmatprep.subr.mxu0 0.0
    %124 = vmatpush2.xpose.msra.mxu0 0.0
    %125 = vmatprep.mubr.f32.mxu0 0.0
    %126 = vmatmul.mubr.f32.gmra.mxu0 %v56
    %v127 = vpop.f32.mrf.mxu0
    %v128 = vadd.f32 0.0, %v127
    %v129 = vpop.f32.mrf.mxu0
    %130 = vdwg.mxu0
    %p131 = scmp.eq.s32.totalorder 0, 0
    // Predicated region
    $region26: #{tpu_custom_call.1} parent=1 // pred_check
      %p132 = pneg %p131
    $region27: #{tpu_custom_call.1} parent=1 // pred_check_branch
      %134 = sbr.rel (%p132) target = $region29
    $region28: #{tpu_custom_call.1} parent=1 // pred_region
      %v135 = vlaneseq
      %v136 = vshrl.u32 %v135, 7
      %v137 = vlaneseq
      %v138 = vand.u32 %v137, 127
      %vm139 = vcmp.eq.s32.totalorder %v136, %v138
      %v140 = vsel %vm139, %v128, 0.0
      %vm141 = vcmask 64512
      %v142 = vsel %vm141, %v140, 0.0
      %143 = vadd.xlane.f32.xlu0 %v142
      %v144 = vpop.xlane.xlu0 %143
      %vm145 = vcmask 7168
      %146 = vst.msk [vmem:[#allocation4] sm:$0xff] %vm145, %v144
      %v147 = vrot.slane %v142, 4
      %v148 = vadd.f32 %v142, %v147
      %v149 = vrot.slane %v148, 2
      %v150 = vadd.f32 %v148, %v149
      %v151 = vrot.slane %v150, 1
      %v152 = vadd.f32 %v150, %v151
      %vm153 = vcmask 57344
      %154 = vst.msk [vmem:[#allocation7] sm:$0x1] %vm153, %v152
    $region29: #{tpu_custom_call.1} parent=1 // pred_fallthru
      _
    %v155 = vld [vmem:[#allocation2] sm:$0xff]
    %vm156 = vcmask 64512
    %v157 = vsel %vm156, %v128, -inf
    %158 = vmax.xlane.f32.xlu0 %v157
    %v159 = vpop.xlane.xlu0 %158
    %v160 = vmax.f32 %v155, %v159
    %v161 = vsub.f32 %v155, %v160
    %v162 = vmul.f32 %v161, 1.442695
    %v163 = vpow.pop %v162
    %v164 = vld [vmem:[#allocation3] sm:$0xff]
    %v165 = vmul.f32 %v163, %v164
    %167 = vset.pattern.permute.xlu0 0
    %168 = vperm.xlu0 %167, %v160
    %v169 = vpop.permute.xlu0 %168
    %v171 = vsub.f32 %v128, %v169
    %v172 = vmul.f32 %v171, 1.442695
    %v173 = vpow.pop %v172
    %v174 = vsel %vm156, %v173, 0.0
    %175 = vadd.xlane.f32.xlu0 %v174
    %v176 = vpop.xlane.xlu0 %175
    %v177 = vadd.f32 %v165, %v176
    %vm178 = vcmask 7168
    %179 = vst.msk [vmem:[#allocation3] sm:$0xff] %vm178, %v177
    %180 = vst.msk [vmem:[#allocation2] sm:$0xff] %vm178, %v160
    %v181 = vld [vmem:[#allocation5] sm:$0x1]
    %v182 = vrot.slane %v157, 4
    %v183 = vmax.f32 %v157, %v182
    %v184 = vrot.slane %v183, 2
    %v185 = vmax.f32 %v183, %v184
    %v186 = vrot.slane %v185, 1
    %v187 = vmax.f32 %v185, %v186
    %v188 = vmax.f32 %v181, %v187
    %v189 = vsub.f32 %v181, %v188
    %v190 = vmul.f32 %v189, 1.442695
    %v191 = vpow.pop %v190
    %v192 = vld [vmem:[#allocation6] sm:$0x1]
    %v193 = vmul.f32 %v191, %v192
    %v195 = vlaneseq
    %v196 = vshrl.u32 %v195, 7
    %v197 = vsub.s32 0, %v196
    %v198 = vrot.slane %v188, %v197
    %v200 = vsub.f32 %v128, %v198
    %v201 = vmul.f32 %v200, 1.442695
    %v202 = vpow.pop %v201
    %v203 = vsel %vm156, %v202, 0.0
    %v204 = vrot.slane %v203, 4
    %v205 = vadd.f32 %v203, %v204
    %v206 = vrot.slane %v205, 2
    %v207 = vadd.f32 %v205, %v206
    %v208 = vrot.slane %v207, 1
    %v209 = vadd.f32 %v207, %v208
    %v210 = vadd.f32 %v193, %v209
    %vm211 = vcmask 57344
    %212 = vst.msk [vmem:[#allocation6] sm:$0x1] %vm211, %v210
    %213 = vst.msk [vmem:[#allocation5] sm:$0x1] %vm211, %v188
    // Predicated region
    $region30: #{tpu_custom_call.1} parent=1 // pred_check
      %p214 = pneg %p38
    $region31: #{tpu_custom_call.1} parent=1 // pred_check_branch
      %216 = sbr.rel (%p214) target = $region33
    $region32: #{tpu_custom_call.1} parent=1 // pred_region
      %v217 = vld [vmem:[#allocation3] sm:$0xff]
      %v218 = vlog2.pop %v217
      %v219 = vmul.f32 %v218, 0.6931472
      %v220 = vld [vmem:[#allocation2] sm:$0xff]
      %v221 = vadd.f32 %v219, %v220
      %v222 = vld [vmem:[#allocation4] sm:$0xff]
      %v223 = vsub.f32 %v221, %v222
      %224 = vst.msk [vmem:[%s2] sm:$0xff] %vm178, %v223
    $region33: #{tpu_custom_call.1} parent=1 // pred_fallthru
      _
    // Predicated region
    $region34: #{tpu_custom_call.1} parent=1 // pred_check
      %p225 = pneg %p45
    $region35: #{tpu_custom_call.1} parent=1 // pred_check_branch
      %227 = sbr.rel (%p225) target = $region37
    $region36: #{tpu_custom_call.1} parent=1 // pred_region
      %v228 = vld [vmem:[#allocation6] sm:$0x1]
      %v229 = vlog2.pop %v228
      %v230 = vmul.f32 %v229, 0.6931472
      %v231 = vld [vmem:[#allocation5] sm:$0x1]
      %v232 = vadd.f32 %v230, %v231
      %v233 = vld [vmem:[#allocation7] sm:$0x1]
      %v234 = vsub.f32 %v232, %v233
      %235 = vst.msk [vmem:[#allocation13] sm:$0x1] %vm211, %v234
    $region37: #{tpu_custom_call.1} parent=1 // pred_fallthru
      _
    // Predicated region
    $region38: #{tpu_custom_call.1} parent=1 // pred_check
      _
    $region39: #{tpu_custom_call.1} parent=1 // pred_check_branch
      %237 = sbr.rel (0) target = $region41
    $region40: #{tpu_custom_call.1} parent=1 // pred_region
      _
    $region41: #{tpu_custom_call.1} parent=1 // pred_fallthru
      _
    // Predicated region
    $region42: #{tpu_custom_call.1} parent=1 // pred_check
      _
    $region43: #{tpu_custom_call.1} parent=1 // pred_check_branch
      %239 = sbr.rel (0) target = $region45
    $region44: #{tpu_custom_call.1} parent=1 // pred_region
      %s241 = ssub.s32 16, 16
      %242 = vsyncadd [#allocation10], %s241
      %s244 = sshll.u32 [#allocation13], 4
      %s245 = int_to_ptr.vmem [resolvable:$true] %s244
      %247 = dma.vmem_to_hbm [thread:$0]  %s245, 16, %s3, [#allocation10]
    $region45: #{tpu_custom_call.1} parent=1 // pred_fallthru
      _
    // Predicated region
    $region46: #{tpu_custom_call.1} parent=1 // pred_check
      _
    $region47: #{tpu_custom_call.1} parent=1 // pred_check_branch
      %249 = sbr.rel (0) target = $region49
    $region48: #{tpu_custom_call.1} parent=1 // pred_region
      _
    $region49: #{tpu_custom_call.1} parent=1 // pred_fallthru
      _
    // Predicated region
    $region50: #{tpu_custom_call.1} parent=1 // pred_check
      _
    $region51: #{tpu_custom_call.1} parent=1 // pred_check_branch
      %251 = sbr.rel (0) target = $region53
    $region52: #{tpu_custom_call.1} parent=1 // pred_region
      %252 = dma.done [#allocation10], 16
    $region53: #{tpu_custom_call.1} parent=1 // pred_fallthru
      _
    %253 = vsyncpa [#allocation9], 1
    %254 = vsyncpa [#allocation12], 1
    %255 = vsyncpa [#allocation10], 1

</llo_original>
